<compile_context>
chip_gen: v5e
topology: v5e:2x2
jax: 0.10.0
libtpu: 0.0.40
codegen_flags: <defaults>
</compile_context>

<pallas_src>
import math

import jax
import jax.numpy as jnp
from jax.experimental import pallas as pl
from jax.experimental.pallas import tpu as pltpu


# ----------------------------------------------------------------------------
# Pallas kernel: fused conv1+conv2 matmul -> InstanceNorm2d x2 -> gate
# One sample per grid step (grid axis b is "parallel").
# ----------------------------------------------------------------------------
def gated_conv2d_kernel(w_ref, xcol_ref, out_ref):
    """
    w_ref    : (2*Cout, KC_pad)  bf16 fused [w1 ; w2], rows = output channels
    xcol_ref : (KC_pad, L)       bf16 im2col columns of sample b (lane dim = L)
    out_ref  : (Cout, L)         f32  gated output of sample b, channels-first
    """
    cout = out_ref.shape[0]

    # Single MXU pass, result lands channels-first -> no epilogue transposes.
    y = jnp.dot(w_ref[...], xcol_ref[...],
                preferred_element_type=jnp.float32)            # (2*Cout, L)

    # InstanceNorm2d (affine=False, eps=1e-5): per-channel stats over spatial.
    # Conv bias is intentionally omitted: a per-channel constant cancels
    # exactly under the mean subtraction below.
    mean = jnp.mean(y, axis=-1, keepdims=True)
    var = jnp.mean(jnp.square(y - mean), axis=-1, keepdims=True)
    yn = (y - mean) * jax.lax.rsqrt(var + 1e-5)

    gate = yn[:cout, :] * jax.nn.sigmoid(yn[cout:, :])         # (Cout, L) f32
    out_ref[...] = gate.astype(out_ref.dtype)


# ----------------------------------------------------------------------------
# Wrapper: im2col (already in (KC, B*L) orientation) + fused weights + call
# ----------------------------------------------------------------------------
def gated_conv2d(x_nchw, w1, b1, w2, b2, *, stride=1, padding=0):
    del b1, b2  # mathematically dead under InstanceNorm2d(affine=False)

    B, Cin, H, W = x_nchw.shape
    Cout, _, Kh, Kw = w1.shape
    Hout = (H + 2 * padding - Kh) // stride + 1
    Wout = (W + 2 * padding - Kw) // stride + 1
    L = Hout * Wout
    KC = Kh * Kw * Cin
    KC_pad = ((KC + 15) // 16) * 16        # bf16 sublane tile alignment

    # im2col -> (KC, B*L): rows ordered (kh, kw, cin), cols ordered (b, ho, wo).
    xp = jnp.pad(x_nchw, ((0, 0), (0, 0), (padding, padding), (padding, padding)))
    patches = [
        xp[:, :,
           kh:kh + stride * (Hout - 1) + 1:stride,
           kw:kw + stride * (Wout - 1) + 1:stride]             # (B, Cin, Hout, Wout)
        for kh in range(Kh) for kw in range(Kw)
    ]
    xcol = jnp.stack(patches, axis=0)                          # (K*K, B, Cin, Hout, Wout)
    xcol = jnp.transpose(xcol, (0, 2, 1, 3, 4))                # (K*K, Cin, B, Hout, Wout)
    xcol = xcol.reshape(KC, B * L)
    xcol = jnp.pad(xcol, ((0, KC_pad - KC), (0, 0))).astype(jnp.bfloat16)

    def to_mat(w):  # (Cout, Cin, Kh, Kw) -> (Cout, KC), cols ordered (kh, kw, cin)
        return jnp.transpose(w, (0, 2, 3, 1)).reshape(Cout, KC)

    w_fused = jnp.concatenate([to_mat(w1), to_mat(w2)], axis=0)        # (2*Cout, KC)
    w_fused = jnp.pad(w_fused, ((0, 0), (0, KC_pad - KC))).astype(jnp.bfloat16)

    cost = pl.CostEstimate(
        flops=2 * (2 * Cout) * KC * B * L,
        transcendentals=B * Cout * L + 2 * B * Cout,
        bytes_accessed=(2 * Cout) * KC_pad * 2 + KC_pad * B * L * 2 + B * Cout * L * 4,
    )

    out = pl.pallas_call(
        gated_conv2d_kernel,
        out_shape=jax.ShapeDtypeStruct((B, Cout, L), jnp.float32),
        grid=(B,),
        in_specs=[
            pl.BlockSpec((2 * Cout, KC_pad), lambda b: (0, 0)),   # full weights each step
            pl.BlockSpec((KC_pad, L), lambda b: (0, b)),          # sample b's columns
        ],
        out_specs=pl.BlockSpec((None, Cout, L), lambda b: (b, 0, 0)),  # squeezed batch dim
        compiler_params=pltpu.CompilerParams(
            dimension_semantics=("parallel",),
            vmem_limit_bytes=32 * 1024 * 1024,
        ),
        cost_estimate=cost,
    )(w_fused, xcol)

    return out.reshape(B, Cout, Hout, Wout)


# ----------------------------------------------------------------------------
# Pure-JAX reference (same bf16-quantized conv inputs) for a sanity check
# ----------------------------------------------------------------------------
def reference_gated_conv2d(x, w1, b1, w2, b2, stride, padding):
    xq = x.astype(jnp.bfloat16).astype(jnp.float32)

    def branch(w, b):
        wq = w.astype(jnp.bfloat16).astype(jnp.float32)
        y = jax.lax.conv_general_dilated(
            xq, wq,
            window_strides=(stride, stride),
            padding=[(padding, padding), (padding, padding)],
            dimension_numbers=("NCHW", "OIHW", "NCHW"),
            preferred_element_type=jnp.float32,
            precision=jax.lax.Precision.HIGHEST,
        ) + b.reshape(1, -1, 1, 1)
        mean = jnp.mean(y, axis=(2, 3), keepdims=True)
        var = jnp.mean(jnp.square(y - mean), axis=(2, 3), keepdims=True)
        return (y - mean) * jax.lax.rsqrt(var + 1e-5)

    y1 = branch(w1, b1)
    y2 = branch(w2, b2)
    return y1 * jax.nn.sigmoid(y2)


if __name__ == "__main__":
    # GatedConv2d(in_channel=4, out_channel=16, kernel_size=3, stride=1, padding=1)
    B, CIN, H, W = 2, 4, 16, 16
    COUT, K, STRIDE, PAD = 16, 3, 1, 1

    key = jax.random.PRNGKey(0)
    kx, k1, k2, k3, k4 = jax.random.split(key, 5)
    fan_in = CIN * K * K
    x = jax.random.normal(kx, (B, CIN, H, W), jnp.float32)
    w1 = jax.random.normal(k1, (COUT, CIN, K, K), jnp.float32) / math.sqrt(fan_in)
    b1 = jax.random.normal(k2, (COUT,), jnp.float32) * 0.01
    w2 = jax.random.normal(k3, (COUT, CIN, K, K), jnp.float32) / math.sqrt(fan_in)
    b2 = jax.random.normal(k4, (COUT,), jnp.float32) * 0.01

    out = gated_conv2d(x, w1, b1, w2, b2, stride=STRIDE, padding=PAD)
    out = jax.block_until_ready(out)
    assert out.shape == (B, COUT, H, W), out.shape
    assert bool(jnp.all(jnp.isfinite(out))), "non-finite output"

    ref = jax.block_until_ready(
        reference_gated_conv2d(x, w1, b1, w2, b2, STRIDE, PAD))
    err = float(jnp.max(jnp.abs(out - ref)))
    assert err < 1e-2, f"mismatch vs reference: max abs err = {err}"

    print("KERNEL_OK")
</pallas_src>

<mosaic_0001>
module attributes {stable_mosaic.version = 11 : i64} {
  func.func @gated_conv2d_kernel(%arg0: i32, %arg1: memref<32x48xbf16, #tpu.memory_space<vmem>>, %arg2: memref<48x256xbf16, #tpu.memory_space<vmem>>, %arg3: memref<1x16x256xf32, #tpu.memory_space<vmem>>) attributes {dimension_semantics = [#tpu.dimension_semantics<parallel>], iteration_bounds = array<i64: 2>, scalar_prefetch = 0 : i64, scratch_operands = 0 : i64, tpu.core_type = #tpu.core_type<tc>, window_params = [{pipeline_mode = #tpu.pipeline_mode<synchronous>, transform_indices = @transform_0, window_bounds = array<i64: 32, 48>}, {transform_indices = @transform_1, window_bounds = array<i64: 48, 256>}, {transform_indices = @transform_2, window_bounds = array<i64: 1, 16, 256>}]} {
    %c0 = arith.constant 0 : index
    %c0_0 = arith.constant 0 : index
    %0 = vector.load %arg1[%c0, %c0_0] : memref<32x48xbf16, #tpu.memory_space<vmem>>, vector<32x48xbf16>
    %c0_1 = arith.constant 0 : index
    %c0_2 = arith.constant 0 : index
    %1 = vector.load %arg2[%c0_1, %c0_2] : memref<48x256xbf16, #tpu.memory_space<vmem>>, vector<48x256xbf16>
    %cst = arith.constant dense<0.000000e+00> : vector<32x256xf32>
    %2 = tpu.matmul %0, %1, %cst {dimension_numbers = #tpu.dot_dimension_numbers<[1], [0], [0], [1], [0, 0, 1, 1], [], []>} : vector<32x48xbf16>, vector<48x256xbf16>, vector<32x256xf32> -> vector<32x256xf32>
    %cst_3 = arith.constant dense<0.000000e+00> : vector<32xf32>
    %3 = vector.multi_reduction <add>, %2, %cst_3 [1] : vector<32x256xf32> to vector<32xf32>
    %4 = vector.shape_cast %3 : vector<32xf32> to vector<32x1xf32>
    %cst_4 = arith.constant 2.560000e+02 : f32
    %5 = vector.broadcast %cst_4 : f32 to vector<32x1xf32>
    %6 = arith.divf %4, %5 : vector<32x1xf32>
    %7 = vector.broadcast %6 : vector<32x1xf32> to vector<32x256xf32>
    %8 = arith.subf %2, %7 : vector<32x256xf32>
    %9 = arith.mulf %8, %8 : vector<32x256xf32>
    %cst_5 = arith.constant dense<0.000000e+00> : vector<32xf32>
    %10 = vector.multi_reduction <add>, %9, %cst_5 [1] : vector<32x256xf32> to vector<32xf32>
    %11 = vector.shape_cast %10 : vector<32xf32> to vector<32x1xf32>
    %cst_6 = arith.constant 2.560000e+02 : f32
    %12 = vector.broadcast %cst_6 : f32 to vector<32x1xf32>
    %13 = arith.divf %11, %12 : vector<32x1xf32>
    %14 = vector.broadcast %6 : vector<32x1xf32> to vector<32x256xf32>
    %15 = arith.subf %2, %14 : vector<32x256xf32>
    %cst_7 = arith.constant 9.99999974E-6 : f32
    %16 = vector.broadcast %cst_7 : f32 to vector<32x1xf32>
    %17 = arith.addf %13, %16 : vector<32x1xf32>
    %18 = math.rsqrt %17 : vector<32x1xf32>
    %19 = vector.broadcast %18 : vector<32x1xf32> to vector<32x256xf32>
    %20 = arith.mulf %15, %19 : vector<32x256xf32>
    %21 = vector.extract_strided_slice %20 {offsets = [0, 0], sizes = [16, 256], strides = [1, 1]} : vector<32x256xf32> to vector<16x256xf32>
    %22 = vector.extract_strided_slice %20 {offsets = [16, 0], sizes = [16, 256], strides = [1, 1]} : vector<32x256xf32> to vector<16x256xf32>
    %23 = arith.negf %22 : vector<16x256xf32>
    %24 = math.exp %23 : vector<16x256xf32>
    %cst_8 = arith.constant 1.000000e+00 : f32
    %25 = vector.broadcast %cst_8 : f32 to vector<16x256xf32>
    %26 = arith.addf %25, %24 : vector<16x256xf32>
    %27 = arith.divf %25, %26 : vector<16x256xf32>
    %28 = arith.mulf %21, %27 : vector<16x256xf32>
    %c0_9 = arith.constant 0 : index
    %c0_10 = arith.constant 0 : index
    %c0_11 = arith.constant 0 : index
    %29 = vector.load %arg3[%c0_9, %c0_10, %c0_11] : memref<1x16x256xf32, #tpu.memory_space<vmem>>, vector<1x16x256xf32>
    %30 = vector.shape_cast %29 : vector<1x16x256xf32> to vector<16x256xf32>
    %31 = vector.shape_cast %28 : vector<16x256xf32> to vector<1x16x256xf32>
    tpu.vector_store %arg3[%c0_9, %c0_10, %c0_11], %31 {strides = array<i32>} : memref<1x16x256xf32, #tpu.memory_space<vmem>>, vector<1x16x256xf32>,
    return
  }
  func.func @transform_0(%arg0: i32) -> (i32, i32) {
    %c0_i32 = arith.constant 0 : i32
    %c0_i32_0 = arith.constant 0 : i32
    %c0_i32_1 = arith.constant 0 : i32
    return %c0_i32, %c0_i32_0 : i32, i32
  }
  func.func @transform_1(%arg0: i32) -> (i32, i32) {
    %c0_i32 = arith.constant 0 : i32
    %c0_i32_0 = arith.constant 0 : i32
    return %c0_i32, %arg0 : i32, i32
  }
  func.func @transform_2(%arg0: i32) -> (i32, i32, i32) {
    %c0_i32 = arith.constant 0 : i32
    %c0_i32_0 = arith.constant 0 : i32
    %c0_i32_1 = arith.constant 0 : i32
    return %arg0, %c0_i32, %c0_i32_0 : i32, i32, i32
  }
}

</mosaic_0001>

<llo_original>
// kernel: tpu_custom_call.1
$region0: #{tpu_custom_call.1}
  #allocation0 [shape = 'u32[]', space=smem, size = 0x4, offset = 0x4, fixed_abs, tag = 'smem constant byte address 0x4 - core index']
  #allocation1 [shape = 'u32[72,128]{1,0:T(1,128)}', space=vmem, size = 0x9000, scoped, tag = 'internal scratch']
  %s0 = inlined_call_operand.hbm [shape: bf16[32,48], index: 0, kind: input, shape index: {}]
  %s1 = inlined_call_operand.hbm [shape: bf16[48,512], index: 1, kind: input, shape index: {}]
  %s2 = inlined_call_operand.hbm [shape: f32[2,16,256], index: 2, kind: output, shape index: {}]
  %s3 = sld [smem:[#allocation0]]
  $region49: #{tpu_custom_call.1} parent=0
    _
  %s5 = ssub.s32 1, %s3
  %s6 = scalar_select 0, %s5, %s3
  $region1: #{tpu_custom_call.1} parent=0
    #allocation2 [shape = 'u8[8192]{0}', space=vmem, size = 0x2000, scoped, tag = 'input window, operand 0, single buffered']
    #allocation3 [shape = 's32[2]{0}', space=sflag, size = 0x8, scoped, tag = 'scoped memory for tpu_custom_call.1']
    #allocation4 [shape = 's32[2]{0}', space=sflag, size = 0x8, scoped, tag = 'scoped memory for tpu_custom_call.1']
    #allocation5 [shape = 'u8[49152]{0}', space=vmem, size = 0xc000, scoped, tag = 'input window, operand 1']
    #allocation6 [shape = 's32[2]{0}', space=sflag, size = 0x8, scoped, tag = 'scoped memory for tpu_custom_call.1']
    #allocation7 [shape = 'u8[32768]{0}', space=vmem, size = 0x8000, scoped, tag = 'output window, operand 0']
    %7 = vsyncpa [#allocation3], 0
    %8 = vsyncpa [#allocation6], 0
    %s9 = scalar_lea.sflag [#allocation6], 1
    %10 = vsyncpa %s9, 0
    %11 = vsyncpa [#allocation4], 0
    %s12 = scalar_lea.sflag [#allocation4], 1
    %13 = vsyncpa %s12, 0
    loop: start=0, step=1, limit=4
    $region2: #{tpu_custom_call.1} parent=1 // loop_pre_header
      _
    $region3: #{tpu_custom_call.1} parent=1 // loop_header
      %s15 = sphi 0, %s19
      %p16 = scmp.ge.s32.totalorder %s15, 4
      %s23 = sphi 0, %s23
      %s25 = sphi 0, %s23
      %s26 = sphi 0, %s25
      %s40 = sphi 0, %s26
      %s46 = sphi 0, %s48
      %s49 = sphi 0, %s46
      %s50 = sphi 0, %s49
      %s66 = sphi 0, %s50
      %s72 = sphi 0, %s74
      %s75 = sphi 0, %s72
      %s76 = sphi 0, %s75
      %s92 = sphi 0, %s76
    $region4: #{tpu_custom_call.1} parent=1 // loop_header_branch
      %18 = sbr.rel (%p16) target = $region8
    $region5: #{tpu_custom_call.1} parent=1 // loop_body
      %s20 = ssub.s32 %s15, 1
      %s21 = ssub.s32 %s15, 2
      %s22 = sadd.s32 %s15, 1
      %s24 = sadd.s32 %s23, 1
      %p27 = scmp.eq.s32.totalorder %s15, 1
      %p28 = scmp.ne.s32.totalorder %s23, %s25
      %p29 = scmp.eq.s32.totalorder %s15, 0
      %p30 = por %p28, %p29
      %p31 = scmp.ne.s32.totalorder %s23, %s25
      %p32 = scmp.eq.s32.totalorder %s20, 1
      %p33 = por %p31, %p32
      %p34 = scmp.ne.s32.totalorder %s25, %s26
      %p35 = scmp.eq.s32.totalorder %s20, 0
      %p36 = por %p34, %p35
      %p37 = scmp.ne.s32.totalorder %s25, %s26
      %p38 = scmp.eq.s32.totalorder %s21, 1
      %p39 = por %p37, %p38
      %p41 = scmp.ne.s32.totalorder %s26, %s40
      %p42 = scmp.eq.s32.totalorder %s21, 0
      %p43 = por %p41, %p42
      %s44 = ssub.s32 %s15, %s22
      %p45 = scmp.eq.s32.totalorder %s44, 0
      %s47 = sadd.s32 %s46, 1
      %s48 = scalar_select %p45, %s46, %s47
      %p51 = pneg %p45
      %p52 = scmp.eq.s32.totalorder %s15, 1
      %p53 = por %p51, %p52
      %p54 = scmp.ne.s32.totalorder %s46, %s49
      %p55 = scmp.eq.s32.totalorder %s15, 0
      %p56 = por %p54, %p55
      %p57 = scmp.ne.s32.totalorder %s46, %s49
      %p58 = scmp.eq.s32.totalorder %s20, 1
      %p59 = por %p57, %p58
      %p60 = scmp.ne.s32.totalorder %s49, %s50
      %p61 = scmp.eq.s32.totalorder %s20, 0
      %p62 = por %p60, %p61
      %p63 = scmp.ne.s32.totalorder %s49, %s50
      %p64 = scmp.eq.s32.totalorder %s21, 1
      %p65 = por %p63, %p64
      %p67 = scmp.ne.s32.totalorder %s50, %s66
      %p68 = scmp.eq.s32.totalorder %s21, 0
      %p69 = por %p67, %p68
      %s70 = ssub.s32 %s15, %s22
      %p71 = scmp.eq.s32.totalorder %s70, 0
      %s73 = sadd.s32 %s72, 1
      %s74 = scalar_select %p71, %s72, %s73
      %p77 = pneg %p71
      %p78 = scmp.eq.s32.totalorder %s15, 1
      %p79 = por %p77, %p78
      %p80 = scmp.ne.s32.totalorder %s72, %s75
      %p81 = scmp.eq.s32.totalorder %s15, 0
      %p82 = por %p80, %p81
      %p83 = scmp.ne.s32.totalorder %s72, %s75
      %p84 = scmp.eq.s32.totalorder %s20, 1
      %p85 = por %p83, %p84
      %p86 = scmp.ne.s32.totalorder %s75, %s76
      %p87 = scmp.eq.s32.totalorder %s20, 0
      %p88 = por %p86, %p87
      %p89 = scmp.ne.s32.totalorder %s75, %s76
      %p90 = scmp.eq.s32.totalorder %s21, 1
      %p91 = por %p89, %p90
      %p93 = scmp.ne.s32.totalorder %s76, %s92
      %p94 = scmp.eq.s32.totalorder %s21, 0
      %p95 = por %p93, %p94
      %p96 = scmp.le.s32.totalorder 1, %s15
      %p97 = scmp.lt.s32.totalorder %s15, 3
      %p98 = pnand %p96, %p97
      %p99 = pneg %p98
      // Predicated region
      $region9: #{tpu_custom_call.1} parent=5 // pred_check
        _
      $region10: #{tpu_custom_call.1} parent=5 // pred_check_branch
        %101 = sbr.rel (%p98) target = $region12
      $region11: #{tpu_custom_call.1} parent=5 // pred_region
        %s102 = ssub.s32 %s15, 1
        // Predicated region
        $region13: #{tpu_custom_call.1} parent=11 // pred_check
          %p103 = pneg %p36
        $region14: #{tpu_custom_call.1} parent=11 // pred_check_branch
          %105 = sbr.rel (%p103) target = $region16
        $region15: #{tpu_custom_call.1} parent=11 // pred_region
          %107 = vsyncadd [#allocation3], 0
          %s108 = sshll.u32 %s0, 4
          %s109 = int_to_ptr.hbm [resolvable:$true] %s108
          %s110 = sshll.u32 [#allocation2], 4
          %s111 = int_to_ptr.vmem [resolvable:$true] %s110
          %116 = dma.hbm_to_vmem [thread:$0]  %s109, 256, %s111, [#allocation3], 64, 64, 4
        $region16: #{tpu_custom_call.1} parent=11 // pred_fallthru
          _
      $region12: #{tpu_custom_call.1} parent=5 // pred_fallthru
        _
      %p117 = scmp.lt.s32.totalorder %s15, 2
      // Predicated region
      $region17: #{tpu_custom_call.1} parent=5 // pred_check
        %p118 = pneg %p117
      $region18: #{tpu_custom_call.1} parent=5 // pred_check_branch
        %120 = sbr.rel (%p118) target = $region20
      $region19: #{tpu_custom_call.1} parent=5 // pred_region
        // Predicated region
        $region21: #{tpu_custom_call.1} parent=19 // pred_check
          %p121 = pneg %p56
        $region22: #{tpu_custom_call.1} parent=19 // pred_check_branch
          %123 = sbr.rel (%p121) target = $region24
        $region23: #{tpu_custom_call.1} parent=19 // pred_region
          %s124 = sand.u32 %s46, 1
          %s125 = scalar_lea.sflag [#allocation6], %s124
          %s126 = sand.u32 %s46, 1
          %s127 = smul.addr %s126, 48
          %s128 = scalar_lea.vmem [#allocation5], %s127
          %s129 = smul.u32 2, %s15
          %131 = vsyncadd %s125, 0
          %s132 = smul.addr %s129, 4
          %s133 = scalar_lea.hbm %s1, %s132
          %s134 = sshll.u32 %s133, 4
          %s135 = int_to_ptr.hbm [resolvable:$true] %s134
          %s136 = sshll.u32 %s128, 4
          %s137 = int_to_ptr.vmem [resolvable:$true] %s136
          %142 = dma.hbm_to_vmem [thread:$0]  %s135, 768, %s137, %s125, 256, 128, 8
        $region24: #{tpu_custom_call.1} parent=19 // pred_fallthru
          _
      $region20: #{tpu_custom_call.1} parent=5 // pred_fallthru
        _
      %p143 = scmp.le.s32.totalorder 1, %s15
      %p144 = scmp.lt.s32.totalorder %s15, 3
      %p145 = pnand %p143, %p144
      %p146 = pneg %p145
      // Predicated region
      $region25: #{tpu_custom_call.1} parent=5 // pred_check
        _
      $region26: #{tpu_custom_call.1} parent=5 // pred_check_branch
        %148 = sbr.rel (%p145) target = $region28
      $region27: #{tpu_custom_call.1} parent=5 // pred_region
        %s149 = ssub.s32 %s15, 1
        // Predicated region
        $region29: #{tpu_custom_call.1} parent=27 // pred_check
          %p150 = pneg %p36
        $region30: #{tpu_custom_call.1} parent=27 // pred_check_branch
          %152 = sbr.rel (%p150) target = $region32
        $region31: #{tpu_custom_call.1} parent=27 // pred_region
          %154 = dma.done [#allocation3], 256
        $region32: #{tpu_custom_call.1} parent=27 // pred_fallthru
          _
        %s155 = sand.u32 %s49, 1
        %s156 = scalar_lea.sflag [#allocation6], %s155
        %s157 = sand.u32 %s49, 1
        %s158 = smul.addr %s157, 48
        %s159 = scalar_lea.vmem [#allocation5], %s158
        // Predicated region
        $region33: #{tpu_custom_call.1} parent=27 // pred_check
          %p160 = pneg %p62
        $region34: #{tpu_custom_call.1} parent=27 // pred_check_branch
          %162 = sbr.rel (%p160) target = $region36
        $region35: #{tpu_custom_call.1} parent=27 // pred_region
          %164 = dma.done %s156, 768
        $region36: #{tpu_custom_call.1} parent=27 // pred_fallthru
          _
        %p165 = pneg %p36
        %p166 = pneg %p33
        %s167 = sand.u32 %s49, 1
        %s168 = scalar_lea.sflag [#allocation6], %s167
        %s169 = sand.u32 %s49, 1
        %s170 = smul.addr %s169, 48
        %s171 = scalar_lea.vmem [#allocation5], %s170
        %p172 = pneg %p62
        %p173 = pneg %p59
        %p174 = pneg %p88
        %p175 = pneg %p85
        %s176 = sand.u32 %s75, 1
        %s177 = scalar_lea.sflag [#allocation4], %s176
        %s178 = sand.u32 %s75, 1
        %s179 = smul.addr %s178, 32
        %s180 = scalar_lea.vmem [#allocation7], %s179
        %s181 = smul.u32 2, %s20
        %v183 = vld [vmem:[#allocation2] sm:$0xf]
        %v184 = vld [vmem:[#allocation2 + $0x4] sm:$0xf]
        %v185 = vld [vmem:[#allocation2 + $0x8] sm:$0xf]
        %v186 = vld [vmem:[#allocation2 + $0xc] sm:$0xf]
        %v187 = vld [vmem:[%s159] sm:$0xff]
        %v188 = vld [vmem:[%s159 + $0x8] sm:$0xff]
        %v189 = vld [vmem:[%s159 + $0x10] sm:$0xff]
        %v190 = vld [vmem:[%s159 + $0x18] sm:$0xff]
        %v191 = vld [vmem:[%s159 + $0x20] sm:$0xff]
        %v192 = vld [vmem:[%s159 + $0x28] sm:$0xff]
        %v197 = vunpack.c.l.b16 %v183
        %v198 = vunpack.c.l.b16 %v184
        %v199 = vunpack.c.l.b16 %v185
        %v200 = vunpack.c.l.b16 %v186
        %v201 = vpack.c.b16 %v198, %v197
        %v202 = vpack.c.b16 %v200, %v199
        %v209 = vunpack.c.l.b16 %v187
        %v210 = vunpack.c.h.b16 %v187
        %v211 = vunpack.c.l.b16 %v188
        %v212 = vunpack.c.h.b16 %v188
        %v213 = vunpack.c.l.b16 %v189
        %v214 = vunpack.c.h.b16 %v189
        %v215 = vunpack.c.l.b16 %v190
        %v216 = vunpack.c.h.b16 %v190
        %v217 = vunpack.c.l.b16 %v191
        %v218 = vunpack.c.h.b16 %v191
        %v219 = vunpack.c.l.b16 %v192
        %v220 = vunpack.c.h.b16 %v192
        %v221 = vpack.c.b16 %v211, %v209
        %v222 = vpack.c.b16 %v212, %v210
        %v223 = vpack.c.b16 %v215, %v213
        %v224 = vpack.c.b16 %v216, %v214
        %v225 = vpack.c.b16 %v219, %v217
        %v226 = vpack.c.b16 %v220, %v218
        %vm233 = vcmask 392192
        %v235 = vsel %vm233, %v201, 0
        %v238 = vsel %vm233, %v202, 0
        %240 = vmatpush.bf16.msra.mxu0 0
        %241 = vmatpush.bf16.msra.mxu0 0
        %242 = vmatpush.bf16.msra.mxu0 0
        %243 = vmatpush.bf16.msra.mxu0 0
        %244 = vmatpush.bf16.msra.mxu0 0
        %245 = vmatpush.bf16.msra.mxu0 %v225
        %246 = vmatpush.bf16.msra.mxu0 %v223
        %247 = vmatpush.bf16.msra.mxu0 %v221
        %248 = vmatmul.bf16.gmra.mxu0 %v235
        %v249 = vpop.f32.mrf.mxu0
        %v250 = vadd.f32 0.0, %v249
        %v251 = vpop.f32.mrf.mxu0
        %v252 = vadd.f32 0.0, %v251
        %253 = vmatmul.bf16.gmra.mxu0 %v238
        %v254 = vpop.f32.mrf.mxu0
        %v255 = vadd.f32 0.0, %v254
        %v256 = vpop.f32.mrf.mxu0
        %v257 = vadd.f32 0.0, %v256
        %258 = vdwg.mxu0
        %259 = vmatpush.bf16.msra.mxu0 0
        %260 = vmatpush.bf16.msra.mxu0 0
        %261 = vmatpush.bf16.msra.mxu0 0
        %262 = vmatpush.bf16.msra.mxu0 0
        %263 = vmatpush.bf16.msra.mxu0 0
        %264 = vmatpush.bf16.msra.mxu0 %v226
        %265 = vmatpush.bf16.msra.mxu0 %v224
        %266 = vmatpush.bf16.msra.mxu0 %v222
        %267 = vmatmul.bf16.gmra.mxu0 %v235
        %v268 = vpop.f32.mrf.mxu0
        %v269 = vadd.f32 0.0, %v268
        %v270 = vpop.f32.mrf.mxu0
        %v271 = vadd.f32 0.0, %v270
        %272 = vmatmul.bf16.gmra.mxu0 %v238
        %v273 = vpop.f32.mrf.mxu0
        %v274 = vadd.f32 0.0, %v273
        %v275 = vpop.f32.mrf.mxu0
        %v276 = vadd.f32 0.0, %v275
        %277 = vdwg.mxu0
        %v278 = vadd.f32 %v250, %v269
        %279 = vadd.xlane.f32.xlu0 %v278
        %v280 = vpop.xlane.xlu0 %279
        %v281 = vadd.f32 %v252, %v271
        %282 = vadd.xlane.f32.xlu0 %v281
        %v283 = vpop.xlane.xlu0 %282
        %v284 = vadd.f32 %v255, %v274
        %285 = vadd.xlane.f32.xlu0 %v284
        %v286 = vpop.xlane.xlu0 %285
        %v287 = vadd.f32 %v257, %v276
        %288 = vadd.xlane.f32.xlu0 %v287
        %v289 = vpop.xlane.xlu0 %288
        %v290 = vrcp.pop 256.0
        %v291 = vmul.f32 256.0, %v290
        %v292 = vsub.f32 1.0, %v291
        %v293 = vmul.f32 %v290, %v292
        %v294 = vadd.f32 %v290, %v293
        %vm295 = vweird.f32 %v290
        %v296 = vsel %vm295, %v290, %v294
        %v297 = vmul.f32 %v280, %v296
        %v298 = vmul.f32 %v283, %v296
        %v299 = vmul.f32 %v286, %v296
        %v300 = vmul.f32 %v289, %v296
        %v301 = vsub.f32 %v250, %v297
        %v302 = vsub.f32 %v269, %v297
        %v303 = vsub.f32 %v252, %v298
        %v304 = vsub.f32 %v271, %v298
        %v305 = vsub.f32 %v255, %v299
        %v306 = vsub.f32 %v274, %v299
        %v307 = vsub.f32 %v257, %v300
        %v308 = vsub.f32 %v276, %v300
        %v309 = vmul.f32 %v301, %v301
        %v310 = vmul.f32 %v302, %v302
        %v311 = vmul.f32 %v303, %v303
        %v312 = vmul.f32 %v304, %v304
        %v313 = vmul.f32 %v305, %v305
        %v314 = vmul.f32 %v306, %v306
        %v315 = vmul.f32 %v307, %v307
        %v316 = vmul.f32 %v308, %v308
        %v317 = vadd.f32 %v309, %v310
        %318 = vadd.xlane.f32.xlu0 %v317
        %v319 = vpop.xlane.xlu0 %318
        %v320 = vadd.f32 %v311, %v312
        %321 = vadd.xlane.f32.xlu0 %v320
        %v322 = vpop.xlane.xlu0 %321
        %v323 = vadd.f32 %v313, %v314
        %324 = vadd.xlane.f32.xlu0 %v323
        %v325 = vpop.xlane.xlu0 %324
        %v326 = vadd.f32 %v315, %v316
        %327 = vadd.xlane.f32.xlu0 %v326
        %v328 = vpop.xlane.xlu0 %327
        %v329 = vmul.f32 %v319, %v296
        %v330 = vmul.f32 %v322, %v296
        %v331 = vmul.f32 %v325, %v296
        %v332 = vmul.f32 %v328, %v296
        %v333 = vadd.f32 %v329, 1e-05
        %v334 = vadd.f32 %v330, 1e-05
        %v335 = vadd.f32 %v331, 1e-05
        %v336 = vadd.f32 %v332, 1e-05
        %v337 = vrsqrt.pop %v333
        %v338 = vmul.f32 %v337, %v333
        %v339 = vmul.f32 %v338, %v337
        %v340 = vmul.f32 0.5, %v339
        %v341 = vsub.f32 1.5, %v340
        %v342 = vmul.f32 %v337, %v341
        %vm343 = vweird.f32 %v333
        %vm344 = vweird.f32 %v337
        %vm345 = vmor %vm343, %vm344
        %v346 = vsel %vm345, %v337, %v342
        %v347 = vrsqrt.pop %v334
        %v348 = vmul.f32 %v347, %v334
        %v349 = vmul.f32 %v348, %v347
        %v350 = vmul.f32 0.5, %v349
        %v351 = vsub.f32 1.5, %v350
        %v352 = vmul.f32 %v347, %v351
        %vm353 = vweird.f32 %v334
        %vm354 = vweird.f32 %v347
        %vm355 = vmor %vm353, %vm354
        %v356 = vsel %vm355, %v347, %v352
        %v357 = vrsqrt.pop %v335
        %v358 = vmul.f32 %v357, %v335
        %v359 = vmul.f32 %v358, %v357
        %v360 = vmul.f32 0.5, %v359
        %v361 = vsub.f32 1.5, %v360
        %v362 = vmul.f32 %v357, %v361
        %vm363 = vweird.f32 %v335
        %vm364 = vweird.f32 %v357
        %vm365 = vmor %vm363, %vm364
        %v366 = vsel %vm365, %v357, %v362
        %v367 = vrsqrt.pop %v336
        %v368 = vmul.f32 %v367, %v336
        %v369 = vmul.f32 %v368, %v367
        %v370 = vmul.f32 0.5, %v369
        %v371 = vsub.f32 1.5, %v370
        %v372 = vmul.f32 %v367, %v371
        %vm373 = vweird.f32 %v336
        %vm374 = vweird.f32 %v367
        %vm375 = vmor %vm373, %vm374
        %v376 = vsel %vm375, %v367, %v372
        %v377 = vmul.f32 %v301, %v346
        %v378 = vmul.f32 %v302, %v346
        %v379 = vmul.f32 %v303, %v356
        %v380 = vmul.f32 %v304, %v356
        %v381 = vmul.f32 %v305, %v366
        %v382 = vmul.f32 %v306, %v366
        %v383 = vmul.f32 %v307, %v376
        %v384 = vmul.f32 %v308, %v376
        %v385 = vxor.u32 %v381, 2147483648
        %v386 = vxor.u32 %v382, 2147483648
        %v387 = vxor.u32 %v383, 2147483648
        %v388 = vxor.u32 %v384, 2147483648
        %v389 = vmul.f32 %v385, 1.442695
        %v390 = vpow.pop %v389
        %v391 = vmul.f32 %v386, 1.442695
        %v392 = vpow.pop %v391
        %v393 = vmul.f32 %v387, 1.442695
        %v394 = vpow.pop %v393
        %v395 = vmul.f32 %v388, 1.442695
        %v396 = vpow.pop %v395
        %v397 = vadd.f32 %v390, 1.0
        %v398 = vadd.f32 %v392, 1.0
        %v399 = vadd.f32 %v394, 1.0
        %v400 = vadd.f32 %v396, 1.0
        %v401 = vrcp.pop %v397
        %v402 = vmul.f32 %v397, %v401
        %v403 = vsub.f32 1.0, %v402
        %v404 = vmul.f32 %v401, %v403
        %v405 = vadd.f32 %v401, %v404
        %vm406 = vweird.f32 %v397
        %vm407 = vweird.f32 %v401
        %vm408 = vmor %vm406, %vm407
        %v409 = vsel %vm408, %v401, %v405
        %v410 = vand.u32 2147483647, %v397
        %vm411 = vcmp.eq.f32.partialorder %v410, 8.507059e+37
        %v412 = vand.u32 %v397, 2147483648
        %v413 = vor.u32 1.1754944e-38, %v412
        %v414 = vsel %vm411, %v413, %v409
        %v415 = vmul.f32 1.0, %v414
        %v416 = vrcp.pop %v398
        %v417 = vmul.f32 %v398, %v416
        %v418 = vsub.f32 1.0, %v417
        %v419 = vmul.f32 %v416, %v418
        %v420 = vadd.f32 %v416, %v419
        %vm421 = vweird.f32 %v398
        %vm422 = vweird.f32 %v416
        %vm423 = vmor %vm421, %vm422
        %v424 = vsel %vm423, %v416, %v420
        %v425 = vand.u32 2147483647, %v398
        %vm426 = vcmp.eq.f32.partialorder %v425, 8.507059e+37
        %v427 = vand.u32 %v398, 2147483648
        %v428 = vor.u32 1.1754944e-38, %v427
        %v429 = vsel %vm426, %v428, %v424
        %v430 = vmul.f32 1.0, %v429
        %v431 = vrcp.pop %v399
        %v432 = vmul.f32 %v399, %v431
        %v433 = vsub.f32 1.0, %v432
        %v434 = vmul.f32 %v431, %v433
        %v435 = vadd.f32 %v431, %v434
        %vm436 = vweird.f32 %v399
        %vm437 = vweird.f32 %v431
        %vm438 = vmor %vm436, %vm437
        %v439 = vsel %vm438, %v431, %v435
        %v440 = vand.u32 2147483647, %v399
        %vm441 = vcmp.eq.f32.partialorder %v440, 8.507059e+37
        %v442 = vand.u32 %v399, 2147483648
        %v443 = vor.u32 1.1754944e-38, %v442
        %v444 = vsel %vm441, %v443, %v439
        %v445 = vmul.f32 1.0, %v444
        %v446 = vrcp.pop %v400
        %v447 = vmul.f32 %v400, %v446
        %v448 = vsub.f32 1.0, %v447
        %v449 = vmul.f32 %v446, %v448
        %v450 = vadd.f32 %v446, %v449
        %vm451 = vweird.f32 %v400
        %vm452 = vweird.f32 %v446
        %vm453 = vmor %vm451, %vm452
        %v454 = vsel %vm453, %v446, %v450
        %v455 = vand.u32 2147483647, %v400
        %vm456 = vcmp.eq.f32.partialorder %v455, 8.507059e+37
        %v457 = vand.u32 %v400, 2147483648
        %v458 = vor.u32 1.1754944e-38, %v457
        %v459 = vsel %vm456, %v458, %v454
        %v460 = vmul.f32 1.0, %v459
        %v461 = vmul.f32 %v377, %v415
        %v462 = vmul.f32 %v378, %v430
        %v463 = vmul.f32 %v379, %v445
        %v464 = vmul.f32 %v380, %v460
        %465 = vst [vmem:[%s180] sm:$0xff] %v461
        %466 = vst [vmem:[%s180 + $0x8] sm:$0xff] %v462
        %467 = vst [vmem:[%s180 + $0x10] sm:$0xff] %v463
        %468 = vst [vmem:[%s180 + $0x18] sm:$0xff] %v464
        %s469 = sand.u32 %s75, 1
        %s470 = scalar_lea.sflag [#allocation4], %s469
        %s471 = sand.u32 %s75, 1
        %s472 = smul.addr %s471, 32
        %s473 = scalar_lea.vmem [#allocation7], %s472
        // Predicated region
        $region37: #{tpu_custom_call.1} parent=27 // pred_check
          %p474 = pneg %p85
        $region38: #{tpu_custom_call.1} parent=27 // pred_check_branch
          %476 = sbr.rel (%p474) target = $region40
        $region39: #{tpu_custom_call.1} parent=27 // pred_region
          %478 = vsyncadd %s470, 0
          %s479 = smul.addr %s20, 4
          %s480 = smul.addr %s479, 8
          %s481 = scalar_lea.hbm %s2, %s480
          %s482 = sshll.u32 %s473, 4
          %s483 = int_to_ptr.vmem [resolvable:$true] %s482
          %s484 = sshll.u32 %s481, 4
          %s485 = int_to_ptr.hbm [resolvable:$true] %s484
          %490 = dma.vmem_to_hbm [thread:$0]  %s483, 512, %s485, %s470, 256, 256, 16
        $region40: #{tpu_custom_call.1} parent=27 // pred_fallthru
          _
      $region28: #{tpu_custom_call.1} parent=5 // pred_fallthru
        _
      %p491 = scmp.le.s32.totalorder 2, %s15
      // Predicated region
      $region41: #{tpu_custom_call.1} parent=5 // pred_check
        %p492 = pneg %p491
      $region42: #{tpu_custom_call.1} parent=5 // pred_check_branch
        %494 = sbr.rel (%p492) target = $region44
      $region43: #{tpu_custom_call.1} parent=5 // pred_region
        %s495 = ssub.s32 %s15, 2
        // Predicated region
        $region45: #{tpu_custom_call.1} parent=43 // pred_check
          %p496 = pneg %p91
        $region46: #{tpu_custom_call.1} parent=43 // pred_check_branch
          %498 = sbr.rel (%p496) target = $region48
        $region47: #{tpu_custom_call.1} parent=43 // pred_region
          %s499 = sand.u32 %s76, 1
          %s500 = scalar_lea.sflag [#allocation4], %s499
          %s501 = sand.u32 %s76, 1
          %s502 = smul.addr %s501, 32
          %s503 = scalar_lea.vmem [#allocation7], %s502
          %505 = dma.done %s500, 512
        $region48: #{tpu_custom_call.1} parent=43 // pred_fallthru
          _
      $region44: #{tpu_custom_call.1} parent=5 // pred_fallthru
        _
    $region6: #{tpu_custom_call.1} parent=1 // loop_footer
      %s19 = sadd.s32 1, %s15
    $region7: #{tpu_custom_call.1} parent=1 // loop_footer_branch
      %14 = sbr.rel target = $region3
    $region8: #{tpu_custom_call.1} parent=1 // loop_exit
      _
    %506 = vsyncpa [#allocation3], 1
    %s507 = scalar_lea.sflag [#allocation3], 1
    %508 = vsyncpa %s507, 1
    %509 = vsyncpa [#allocation6], 1
    %s510 = scalar_lea.sflag [#allocation6], 1
    %511 = vsyncpa %s510, 1
    %512 = vsyncpa [#allocation4], 1
    %s513 = scalar_lea.sflag [#allocation4], 1
    %514 = vsyncpa %s513, 1

</llo_original>
